<compile_context>
chip_gen: v7x
topology: tpu7x:2x2x1
jax: 0.10.0
libtpu: 0.0.40
codegen_flags: <defaults>
</compile_context>

<pallas_src>
import functools

import jax
import jax.numpy as jnp
from jax.experimental import pallas as pl
from jax.experimental.pallas import tpu as pltpu


# ----------------------------------------------------------------------------
# Kernel
# ----------------------------------------------------------------------------
def _output_processer_kernel(x_ref, mask_ref, o_ref, *, func: str):
    x = x_ref[...].astype(jnp.float32)          # (tb, tc), compute in f32
    keep_pos = mask_ref[...] != 0.0             # (1, tc) bool, broadcasts over rows

    if func == "exp":
        x_pos = jnp.exp(x)
    elif func == "softplus":
        # numerically-stable softplus: log1p(exp(-|x|)) + max(x, 0)
        x_pos = jnp.log1p(jnp.exp(-jnp.abs(x))) + jnp.maximum(x, 0.0)
    elif func == "rectifier":
        # TODO(synk): only_apply_in_test + training-mode passthrough is a
        # train-time branch; this kernel implements the inference forward.
        x_pos = jnp.maximum(x, 0.0)
    else:
        raise ValueError(f"unknown func {func}")

    # Single vsel; mask==0 columns pass x through untouched even when exp(x)
    # is inf (matches masked_fill_ + 0/1-mask blend exactly, NaN-free).
    o_ref[...] = jnp.where(keep_pos, x_pos, x).astype(o_ref.dtype)


# ----------------------------------------------------------------------------
# Tiling heuristic: ~2 MiB of f32 per buffer, (8, 128)-friendly.
# ----------------------------------------------------------------------------
_TARGET_TILE_BYTES = 2 * 1024 * 1024


def _choose_tiles(B: int, C: int) -> tuple[int, int]:
    # Channel tile: keep full C unless C is huge *and* 128-aligned (keeps the
    # output block lane-dense -> unmasked vst; never emits a <128 lane tile).
    if C % 128 == 0 and C * 4 > _TARGET_TILE_BYTES:
        tc = max(128, min(C, (_TARGET_TILE_BYTES // 4 // 128) * 128))
    else:
        tc = C

    # Batch tile: fill the per-buffer budget, multiple of 8 (or full B).
    rows = max(1, _TARGET_TILE_BYTES // (tc * 4))
    if rows >= B:
        tb = B
    else:
        tb = max(8, (rows // 8) * 8)
        tb = min(tb, B)
    return tb, tc


# ----------------------------------------------------------------------------
# Wrapper
# ----------------------------------------------------------------------------
def output_processer(x: jax.Array,
                     positive_output_mask: jax.Array,
                     func: str = "exp",
                     *,
                     block_b: int | None = None,
                     block_c: int | None = None) -> jax.Array:
    """Pallas implementation of OutputProcesser.forward (inference semantics).

    x:    (B, C) array (any float dtype; computed in f32, stored in x.dtype)
    positive_output_mask: (C,) bool/float mask of outputs constrained positive
    """
    B, C = x.shape
    mask2d = positive_output_mask.astype(jnp.float32).reshape(1, C)

    tb_auto, tc_auto = _choose_tiles(B, C)
    tb = tb_auto if block_b is None else min(block_b, B)
    tc = tc_auto if block_c is None else min(block_c, C)

    grid = (pl.cdiv(B, tb), pl.cdiv(C, tc))
    kernel = functools.partial(_output_processer_kernel, func=func)

    return pl.pallas_call(
        kernel,
        out_shape=jax.ShapeDtypeStruct((B, C), x.dtype),
        grid_spec=pltpu.PrefetchScalarGridSpec(
            num_scalar_prefetch=0,
            grid=grid,
            in_specs=[
                pl.BlockSpec((tb, tc), lambda i, j: (i, j)),   # x tile
                pl.BlockSpec((1, tc), lambda i, j: (0, j)),    # mask row
            ],
            out_specs=pl.BlockSpec((tb, tc), lambda i, j: (i, j)),
        ),
        compiler_params=pltpu.CompilerParams(
            dimension_semantics=("parallel", "parallel"),
        ),
    )(x, mask2d)


# ----------------------------------------------------------------------------
# Pure-JAX reference (matches the PyTorch module's forward)
# ----------------------------------------------------------------------------
def _reference(x, mask, func="exp"):
    mask_b = mask.astype(bool).reshape(1, -1)
    xf = x.astype(jnp.float32)
    if func == "exp":
        x_pos = jnp.exp(xf)
        x_pos = jnp.where(mask_b, x_pos, 0.0)     # masked_fill_(~mask, 0)
    elif func == "softplus":
        x_pos = jax.nn.softplus(xf)
    elif func == "rectifier":
        x_pos = jnp.maximum(xf, 0.0)
    else:
        raise ValueError(func)
    out = jnp.where(mask_b, x_pos, xf)            # x_pos*m + x*(1-m), NaN-safe
    return out.astype(x.dtype)


if __name__ == "__main__":
    key = jax.random.PRNGKey(0)
    kx, _ = jax.random.split(key)

    B, C = 16, 128                                 # small, lane-aligned shapes
    x = jax.random.normal(kx, (B, C), dtype=jnp.float32)
    # deterministic buffer init for positive_output_mask (the module's only state)
    positive_output_mask = (jnp.arange(C) % 2 == 0)

    # stress the masked_fill_ semantics: a huge value in a mask==0 column must
    # pass through untouched (no inf*0 -> NaN).
    x = x.at[0, 1].set(100.0)                      # column 1 has mask == False

    # exp (module default)
    out = jax.block_until_ready(output_processer(x, positive_output_mask, func="exp"))
    ref = _reference(x, positive_output_mask, func="exp")
    assert out.shape == (B, C) and out.dtype == jnp.float32
    assert jnp.allclose(out, ref, rtol=1e-6, atol=1e-6)
    assert not jnp.any(jnp.isnan(out))
    assert out[0, 1] == x[0, 1]

    # softplus / rectifier variants
    for f in ("softplus", "rectifier"):
        o = jax.block_until_ready(output_processer(x, positive_output_mask, func=f))
        assert jnp.allclose(o, _reference(x, positive_output_mask, func=f),
                            rtol=1e-5, atol=1e-5)

    # bf16 input: no wrapper upcast, kernel computes in f32 and stores bf16
    x_bf16 = x.astype(jnp.bfloat16)
    o_bf16 = jax.block_until_ready(output_processer(x_bf16, positive_output_mask, func="exp"))
    assert o_bf16.dtype == jnp.bfloat16
    assert jnp.allclose(o_bf16.astype(jnp.float32),
                        _reference(x_bf16, positive_output_mask, func="exp").astype(jnp.float32),
                        rtol=2e-2, atol=2e-2)

    # non-divisible shapes exercise the cdiv grid / partial edge blocks
    B2, C2 = 13, 100
    x2 = jax.random.normal(jax.random.PRNGKey(1), (B2, C2), dtype=jnp.float32)
    m2 = (jnp.arange(C2) % 3 == 0)
    o2 = jax.block_until_ready(output_processer(x2, m2, func="exp"))
    assert jnp.allclose(o2, _reference(x2, m2, func="exp"), rtol=1e-6, atol=1e-6)

    print("KERNEL_OK")
</pallas_src>

<mosaic_0001>
module attributes {stable_mosaic.version = 11 : i64} {
  func.func @_output_processer_kernel(%arg0: i32, %arg1: i32, %arg2: memref<16x128xf32, #tpu.memory_space<vmem>>, %arg3: memref<1x128xf32, #tpu.memory_space<vmem>>, %arg4: memref<16x128xf32, #tpu.memory_space<vmem>>) attributes {dimension_semantics = [#tpu.dimension_semantics<parallel>, #tpu.dimension_semantics<parallel>], iteration_bounds = array<i64: 1, 1>, scalar_prefetch = 0 : i64, scratch_operands = 0 : i64, tpu.core_type = #tpu.core_type<tc>, window_params = [{transform_indices = @transform_0, window_bounds = array<i64: 16, 128>}, {transform_indices = @transform_1, window_bounds = array<i64: 1, 128>}, {transform_indices = @transform_2, window_bounds = array<i64: 16, 128>}]} {
    %c0 = arith.constant 0 : index
    %c0_0 = arith.constant 0 : index
    %0 = vector.load %arg2[%c0, %c0_0] : memref<16x128xf32, #tpu.memory_space<vmem>>, vector<16x128xf32>
    %c0_1 = arith.constant 0 : index
    %c0_2 = arith.constant 0 : index
    %1 = vector.load %arg3[%c0_1, %c0_2] : memref<1x128xf32, #tpu.memory_space<vmem>>, vector<1x128xf32>
    %cst = arith.constant 0.000000e+00 : f32
    %2 = vector.broadcast %cst : f32 to vector<1x128xf32>
    %3 = arith.cmpf one, %1, %2 : vector<1x128xf32>
    %4 = math.exp %0 : vector<16x128xf32>
    %5 = vector.shape_cast %3 : vector<1x128xi1> to vector<1x128xi1>
    %6 = vector.broadcast %5 : vector<1x128xi1> to vector<16x128xi1>
    %7 = arith.select %6, %4, %0 : vector<16x128xi1>, vector<16x128xf32>
    %c0_3 = arith.constant 0 : index
    %c0_4 = arith.constant 0 : index
    %8 = vector.load %arg4[%c0_3, %c0_4] : memref<16x128xf32, #tpu.memory_space<vmem>>, vector<16x128xf32>
    tpu.vector_store %arg4[%c0_3, %c0_4], %7 {strides = array<i32>} : memref<16x128xf32, #tpu.memory_space<vmem>>, vector<16x128xf32>,
    return
  }
  func.func @transform_0(%arg0: i32, %arg1: i32) -> (i32, i32) {
    %c0_i32 = arith.constant 0 : i32
    return %arg0, %arg1 : i32, i32
  }
  func.func @transform_1(%arg0: i32, %arg1: i32) -> (i32, i32) {
    %c0_i32 = arith.constant 0 : i32
    %c0_i32_0 = arith.constant 0 : i32
    return %c0_i32, %arg1 : i32, i32
  }
  func.func @transform_2(%arg0: i32, %arg1: i32) -> (i32, i32) {
    %c0_i32 = arith.constant 0 : i32
    return %arg0, %arg1 : i32, i32
  }
}

</mosaic_0001>

<llo_original>
// kernel: tpu_custom_call.1
$region0: #{tpu_custom_call.1}
  #allocation0 [shape = 'u32[]', space=smem, size = 0x4, offset = 0x4, fixed_abs, tag = 'smem constant byte address 0x4 - core index']
  #allocation1 [shape = 'u32[144,128]{1,0:T(1,128)}', space=vmem, size = 0x12000, scoped, tag = 'internal scratch']
  %s0 = inlined_call_operand.hbm [shape: f32[16,128], index: 0, kind: input, shape index: {}]
  %s1 = inlined_call_operand.vmem [shape: f32[1,128], index: 1, kind: input, shape index: {}]
  %s2 = inlined_call_operand.hbm [shape: f32[16,128], index: 2, kind: output, shape index: {}]
  %s3 = sld [smem:[#allocation0]]
  $region22: #{tpu_custom_call.1} parent=0
    _
  %s5 = ssub.s32 1, %s3
  %s6 = scalar_select 0, %s5, %s3
  $region1: #{tpu_custom_call.1} parent=0
    #allocation2 [shape = 'u8[8192]{0}', space=vmem, size = 0x2000, scoped, tag = 'input window, operand 0, single buffered']
    #allocation3 [shape = 's32[1]{0}', space=sflag, size = 0x4, scoped, tag = 'scoped memory for tpu_custom_call.1']
    #allocation4 [shape = 's32[1]{0}', space=sflag, size = 0x4, scoped, tag = 'scoped memory for tpu_custom_call.1']
    #allocation5 [shape = 'u8[8192]{0}', space=vmem, size = 0x2000, scoped, tag = 'output window, operand 0, single buffered']
    %7 = vsyncpa [#allocation3], 0
    %8 = vsyncpa [#allocation4], 0
    // Predicated region
    $region2: #{tpu_custom_call.1} parent=1 // pred_check
      _
    $region3: #{tpu_custom_call.1} parent=1 // pred_check_branch
      %10 = sbr.rel (0) target = $region5
    $region4: #{tpu_custom_call.1} parent=1 // pred_region
      %s12 = ssub.s32 256, 256
      %13 = vsyncadd [#allocation3], %s12
      %s14 = sshll.u32 [#allocation2], 4
      %s15 = int_to_ptr.vmem [resolvable:$true] %s14
      %20 = dma.hbm_to_vmem [thread:$0]  %s0, 256, %s15, [#allocation3], 128, 128, 8
    $region5: #{tpu_custom_call.1} parent=1 // pred_fallthru
      _
    // Predicated region
    $region6: #{tpu_custom_call.1} parent=1 // pred_check
      _
    $region7: #{tpu_custom_call.1} parent=1 // pred_check_branch
      %22 = sbr.rel (0) target = $region9
    $region8: #{tpu_custom_call.1} parent=1 // pred_region
      _
    $region9: #{tpu_custom_call.1} parent=1 // pred_fallthru
      _
    // Predicated region
    $region10: #{tpu_custom_call.1} parent=1 // pred_check
      _
    $region11: #{tpu_custom_call.1} parent=1 // pred_check_branch
      %24 = sbr.rel (0) target = $region13
    $region12: #{tpu_custom_call.1} parent=1 // pred_region
      %25 = dma.done [#allocation3], 256
    $region13: #{tpu_custom_call.1} parent=1 // pred_fallthru
      _
    %v26 = vld [vmem:[#allocation2] sm:$0xff]
    %v27 = vld [vmem:[#allocation2 + $0x8] sm:$0xff]
    %v28 = vld [vmem:[%s1] sm:$0x1]
    %vm29 = vcmp.ne.f32.partialorder %v28, 0.0
    %v30 = vmul.f32 %v26, 1.442695
    %v31 = vpow.pop %v30
    %v32 = vmul.f32 %v27, 1.442695
    %v33 = vpow.pop %v32
    %v34 = vsel %vm29, 1, 0
    %v35 = vlaneseq
    %v36 = vshrl.u32 %v35, 7
    %v37 = vsub.s32 0, %v36
    %v38 = vrot.slane %v34, %v37
    %vm39 = vcmp.eq.s32.totalorder %v38, 1
    %v40 = vsel %vm39, %v31, %v26
    %v41 = vsel %vm39, %v33, %v27
    %42 = vst [vmem:[#allocation5] sm:$0xff] %v40
    %43 = vst [vmem:[#allocation5 + $0x8] sm:$0xff] %v41
    // Predicated region
    $region14: #{tpu_custom_call.1} parent=1 // pred_check
      _
    $region15: #{tpu_custom_call.1} parent=1 // pred_check_branch
      %45 = sbr.rel (0) target = $region17
    $region16: #{tpu_custom_call.1} parent=1 // pred_region
      %s47 = ssub.s32 256, 256
      %48 = vsyncadd [#allocation4], %s47
      %s49 = sshll.u32 [#allocation5], 4
      %s50 = int_to_ptr.vmem [resolvable:$true] %s49
      %55 = dma.vmem_to_hbm [thread:$0]  %s50, 256, %s2, [#allocation4], 128, 128, 8
    $region17: #{tpu_custom_call.1} parent=1 // pred_fallthru
      _
    // Predicated region
    $region18: #{tpu_custom_call.1} parent=1 // pred_check
      _
    $region19: #{tpu_custom_call.1} parent=1 // pred_check_branch
      %57 = sbr.rel (0) target = $region21
    $region20: #{tpu_custom_call.1} parent=1 // pred_region
      %58 = dma.done [#allocation4], 256
    $region21: #{tpu_custom_call.1} parent=1 // pred_fallthru
      _
    %59 = vsyncpa [#allocation3], 1
    %60 = vsyncpa [#allocation4], 1

</llo_original>
